<compile_context>
chip_gen: v7x
topology: tpu7x:2x2x1
jax: 0.10.0
libtpu: 0.0.40
codegen_flags: <defaults>
</compile_context>

<pallas_src>
import functools

import jax
import jax.numpy as jnp
from jax.experimental import pallas as pl
from jax.experimental.pallas import tpu as pltpu


# ----------------------------- fused Pallas kernel --------------------------

def fused_feature_kernel(x_ref, wconv_ref, bconv_ref, wfc_ref, bfc_ref,
                         conv_ref, pool_ref, fc_ref,
                         *, cin, cout, h, w, b):
    """Fused conv3x3(SAME)+bias -> relu -> global avgpool -> fc for a block of
    `b` samples concatenated along the lane axis."""
    hw = h * w
    bhw = b * hw
    x = x_ref[...]                                            # [cin, b*hw] f32

    # Per-sample (row, col) derived from lane % hw, computed ONCE at (1, bhw).
    lane = jax.lax.broadcasted_iota(jnp.int32, (1, bhw), 1)
    if (hw & (hw - 1)) == 0:                                  # power-of-two hw
        local = lane & (hw - 1)
    else:
        local = lane % hw
    if (w & (w - 1)) == 0:                                    # power-of-two width
        row = local >> (w.bit_length() - 1)
        col = local & (w - 1)
    else:
        row = local // w
        col = local % w

    # Build the 9 boundary-masked, lane-rolled taps and stack them along the
    # cin axis -> ONE MXU dot instead of nine.
    patches = []
    for di in (-1, 0, 1):
        for dj in (-1, 0, 1):
            off = di * w + dj
            # shifted[ci, p] = x[ci, p + off]  (wrap/cross-sample reads are
            # exactly the positions killed by the boundary mask below)
            shifted = x if off == 0 else pltpu.roll(x, (-off) % bhw, 1)
            valid = ((row + di >= 0) & (row + di < h) &
                     (col + dj >= 0) & (col + dj < w))        # (1, bhw), broadcasts
            patches.append(jnp.where(valid, shifted, 0.0))
    patch_all = jnp.concatenate(patches, axis=0)              # [9*cin, b*hw]

    conv = jnp.dot(wconv_ref[...], patch_all,
                   preferred_element_type=jnp.float32) + bconv_ref[...]  # [cout, b*hw]

    wfc = wfc_ref[...]                                        # [cout, nc]
    bfc = bfc_ref[...]                                        # [1, nc]
    for s in range(b):                                        # static unroll, b small
        conv_s = conv[:, s * hw:(s + 1) * hw]                 # lane-aligned slice
        conv_ref[s] = conv_s                                  # lane-dense store
        # relu folded into pooling (standalone relu output not extracted)
        pooled = jnp.mean(jnp.maximum(conv_s, 0.0), axis=-1, keepdims=True)  # [cout,1]
        pool_ref[s] = pooled
        # fc on flattened pooled vector: logits[j] = sum_o pooled[o]*Wfc[o,j]+b[j]
        fc_ref[s] = jnp.sum(pooled * wfc, axis=0, keepdims=True) + bfc      # [1,nc]


# ----------------------------- wrapper ------------------------------------

@jax.jit
def fused_forward(x, conv_w, conv_b, fc_w, fc_b):
    n, cin, h, w = x.shape
    cout = conv_w.shape[0]
    nc = fc_w.shape[1]
    hw = h * w

    # Block batching: one grid step for tiny N (amortize per-step overhead),
    # two parallel steps once N >= 4 so both v7x TensorCores are fed
    # (no-op on single-TC v5e/v6e).
    num_blocks = 2 if (n >= 4 and n % 2 == 0) else 1
    b = n // num_blocks

    # Lane-concatenated input layout [cin, N*hw] (tiny one-time XLA transpose).
    x_lanes = (x.reshape(n, cin, hw).transpose(1, 0, 2)
                .reshape(cin, n * hw).astype(jnp.float32))

    # Conv weights as [cout, 9*cin]; column order (ki, kj, cin) matches the
    # tap-major concatenation order built inside the kernel.
    wconv = conv_w.transpose(0, 2, 3, 1).reshape(cout, 9 * cin).astype(jnp.float32)
    bconv = conv_b.reshape(cout, 1).astype(jnp.float32)
    wfc = fc_w.astype(jnp.float32)
    bfc = fc_b.reshape(1, nc).astype(jnp.float32)

    kernel = functools.partial(fused_feature_kernel,
                               cin=cin, cout=cout, h=h, w=w, b=b)

    conv_o, pool_o, fc_o = pl.pallas_call(
        kernel,
        out_shape=(
            jax.ShapeDtypeStruct((n, cout, hw), jnp.float32),   # conv1 pre-act
            jax.ShapeDtypeStruct((n, cout, 1), jnp.float32),    # pooled features
            jax.ShapeDtypeStruct((n, 1, nc), jnp.float32),      # fc logits
        ),
        grid=(num_blocks,),
        in_specs=[
            pl.BlockSpec((cin, b * hw), lambda i: (0, i)),
            pl.BlockSpec((cout, 9 * cin), lambda i: (0, 0)),
            pl.BlockSpec((cout, 1), lambda i: (0, 0)),
            pl.BlockSpec((cout, nc), lambda i: (0, 0)),
            pl.BlockSpec((1, nc), lambda i: (0, 0)),
        ],
        out_specs=(
            pl.BlockSpec((b, cout, hw), lambda i: (i, 0, 0)),
            pl.BlockSpec((b, cout, 1), lambda i: (i, 0, 0)),
            pl.BlockSpec((b, 1, nc), lambda i: (i, 0, 0)),
        ),
        compiler_params=pltpu.CompilerParams(
            dimension_semantics=("parallel",)),
    )(x_lanes, wconv, bconv, wfc, bfc)

    conv_nchw = conv_o.reshape(n, cout, h, w)                 # metadata reshapes only
    pool_nchw = pool_o.reshape(n, cout, 1, 1)
    logits = fc_o.reshape(n, nc)
    return conv_nchw, pool_nchw, logits


# ------------------------ FeatureExtractor equivalent ----------------------

def feature_extractor_forward(x, params, extracted_layers):
    """Mirrors FeatureExtractor.forward for the conv1/relu/avgpool/fc submodule:
    iterates the children in order, flattens before 'fc', and collects the
    requested activations — but runs the whole chain as one fused Pallas call."""
    conv1, pooled, logits = fused_forward(
        x, params["conv1_w"], params["conv1_b"], params["fc_w"], params["fc_b"])
    per_layer = {"conv1": conv1, "relu": None, "avgpool": pooled, "fc": logits}
    outputs = []
    for name in ("conv1", "relu", "avgpool", "fc"):           # module iteration order
        if name in extracted_layers:
            act = per_layer[name]
            if act is None:
                # 'relu' is not in the extracted set for this config; derive it
                # on demand. If it becomes commonly extracted, emit it as a
                # fourth fused output instead of recomputing in XLA.
                act = jnp.maximum(conv1, 0.0)
            outputs.append(act)
    return outputs


# --------------------------------- main ------------------------------------

if __name__ == "__main__":
    key = jax.random.PRNGKey(0)
    k_x, k_cw, k_cb, k_fw, k_fb = jax.random.split(key, 5)

    N, Cin, H, W = 2, 4, 16, 16
    Cout, n_classes = 8, 10

    x = jax.random.normal(k_x, (N, Cin, H, W), dtype=jnp.float32)
    params = {
        "conv1_w": 0.1 * jax.random.normal(k_cw, (Cout, Cin, 3, 3), jnp.float32),
        "conv1_b": 0.1 * jax.random.normal(k_cb, (Cout,), jnp.float32),
        "fc_w":    0.1 * jax.random.normal(k_fw, (Cout, n_classes), jnp.float32),
        "fc_b":    0.1 * jax.random.normal(k_fb, (n_classes,), jnp.float32),
    }

    extracted_layers = ["conv1", "avgpool", "fc"]
    outputs = feature_extractor_forward(x, params, extracted_layers)
    outputs = [jax.block_until_ready(o) for o in outputs]

    # lightweight correctness check against pure-JAX reference
    ref_conv = jax.lax.conv_general_dilated(
        x, params["conv1_w"], window_strides=(1, 1), padding="SAME",
        dimension_numbers=("NCHW", "OIHW", "NCHW"),
        precision=jax.lax.Precision.HIGHEST,
    ) + params["conv1_b"][None, :, None, None]
    ref_pool = jnp.mean(jnp.maximum(ref_conv, 0.0), axis=(2, 3), keepdims=True)
    ref_fc = jnp.dot(ref_pool.reshape(N, -1), params["fc_w"],
                     precision=jax.lax.Precision.HIGHEST) + params["fc_b"]

    assert outputs[0].shape == (N, Cout, H, W)
    assert outputs[1].shape == (N, Cout, 1, 1)
    assert outputs[2].shape == (N, n_classes)
    assert jnp.allclose(outputs[0], ref_conv, atol=1e-4)
    assert jnp.allclose(outputs[1], ref_pool, atol=1e-4)
    assert jnp.allclose(outputs[2], ref_fc, atol=1e-4)

    print("KERNEL_OK")
</pallas_src>

<mosaic_0001>
module attributes {stable_mosaic.version = 11 : i64} {
  func.func @fused_feature_kernel(%arg0: i32, %arg1: memref<4x512xf32, #tpu.memory_space<vmem>>, %arg2: memref<8x36xf32, #tpu.memory_space<vmem>>, %arg3: memref<8x1xf32, #tpu.memory_space<vmem>>, %arg4: memref<8x10xf32, #tpu.memory_space<vmem>>, %arg5: memref<1x10xf32, #tpu.memory_space<vmem>>, %arg6: memref<2x8x256xf32, #tpu.memory_space<vmem>>, %arg7: memref<2x8x1xf32, #tpu.memory_space<vmem>>, %arg8: memref<2x1x10xf32, #tpu.memory_space<vmem>>) attributes {dimension_semantics = [#tpu.dimension_semantics<parallel>], iteration_bounds = array<i64: 1>, scalar_prefetch = 0 : i64, scratch_operands = 0 : i64, tpu.core_type = #tpu.core_type<tc>, window_params = [{transform_indices = @transform_0, window_bounds = array<i64: 4, 512>}, {pipeline_mode = #tpu.pipeline_mode<synchronous>, transform_indices = @transform_1, window_bounds = array<i64: 8, 36>}, {pipeline_mode = #tpu.pipeline_mode<synchronous>, transform_indices = @transform_2, window_bounds = array<i64: 8, 1>}, {pipeline_mode = #tpu.pipeline_mode<synchronous>, transform_indices = @transform_3, window_bounds = array<i64: 8, 10>}, {pipeline_mode = #tpu.pipeline_mode<synchronous>, transform_indices = @transform_4, window_bounds = array<i64: 1, 10>}, {transform_indices = @transform_5, window_bounds = array<i64: 2, 8, 256>}, {transform_indices = @transform_6, window_bounds = array<i64: 2, 8, 1>}, {transform_indices = @transform_7, window_bounds = array<i64: 2, 1, 10>}]} {
    %c0 = arith.constant 0 : index
    %c0_0 = arith.constant 0 : index
    %0 = vector.load %arg1[%c0, %c0_0] : memref<4x512xf32, #tpu.memory_space<vmem>>, vector<4x512xf32>
    %1 = tpu.iota {dimensions = array<i32: 1>} : vector<1x512xi32>
    %c255_i32 = arith.constant 255 : i32
    %2 = vector.broadcast %c255_i32 : i32 to vector<1x512xi32>
    %3 = arith.andi %1, %2 : vector<1x512xi32>
    %c4_i32 = arith.constant 4 : i32
    %4 = vector.broadcast %c4_i32 : i32 to vector<1x512xi32>
    %5 = arith.shrsi %3, %4 : vector<1x512xi32>
    %c15_i32 = arith.constant 15 : i32
    %6 = vector.broadcast %c15_i32 : i32 to vector<1x512xi32>
    %7 = arith.andi %3, %6 : vector<1x512xi32>
    %c17_i32 = arith.constant 17 : i32
    %8 = tpu.dynamic_rotate %0 by %c17_i32 dim 1 : vector<4x512xf32>, i32 -> vector<4x512xf32>
    %c-1_i32 = arith.constant -1 : i32
    %9 = vector.broadcast %c-1_i32 : i32 to vector<1x512xi32>
    %10 = arith.addi %5, %9 : vector<1x512xi32>
    %c0_i32 = arith.constant 0 : i32
    %11 = vector.broadcast %c0_i32 : i32 to vector<1x512xi32>
    %12 = arith.cmpi sge, %10, %11 : vector<1x512xi32>
    %c-1_i32_1 = arith.constant -1 : i32
    %13 = vector.broadcast %c-1_i32_1 : i32 to vector<1x512xi32>
    %14 = arith.addi %5, %13 : vector<1x512xi32>
    %c16_i32 = arith.constant 16 : i32
    %15 = vector.broadcast %c16_i32 : i32 to vector<1x512xi32>
    %16 = arith.cmpi slt, %14, %15 : vector<1x512xi32>
    %17 = arith.andi %12, %16 : vector<1x512xi1>
    %c-1_i32_2 = arith.constant -1 : i32
    %18 = vector.broadcast %c-1_i32_2 : i32 to vector<1x512xi32>
    %19 = arith.addi %7, %18 : vector<1x512xi32>
    %c0_i32_3 = arith.constant 0 : i32
    %20 = vector.broadcast %c0_i32_3 : i32 to vector<1x512xi32>
    %21 = arith.cmpi sge, %19, %20 : vector<1x512xi32>
    %22 = arith.andi %17, %21 : vector<1x512xi1>
    %c-1_i32_4 = arith.constant -1 : i32
    %23 = vector.broadcast %c-1_i32_4 : i32 to vector<1x512xi32>
    %24 = arith.addi %7, %23 : vector<1x512xi32>
    %c16_i32_5 = arith.constant 16 : i32
    %25 = vector.broadcast %c16_i32_5 : i32 to vector<1x512xi32>
    %26 = arith.cmpi slt, %24, %25 : vector<1x512xi32>
    %27 = arith.andi %22, %26 : vector<1x512xi1>
    %cst = arith.constant 0.000000e+00 : f32
    %28 = vector.shape_cast %27 : vector<1x512xi1> to vector<1x512xi1>
    %29 = vector.broadcast %28 : vector<1x512xi1> to vector<4x512xi1>
    %30 = vector.broadcast %cst : f32 to vector<4x512xf32>
    %31 = arith.select %29, %8, %30 : vector<4x512xi1>, vector<4x512xf32>
    %c16_i32_6 = arith.constant 16 : i32
    %32 = tpu.dynamic_rotate %0 by %c16_i32_6 dim 1 : vector<4x512xf32>, i32 -> vector<4x512xf32>
    %c-1_i32_7 = arith.constant -1 : i32
    %33 = vector.broadcast %c-1_i32_7 : i32 to vector<1x512xi32>
    %34 = arith.addi %5, %33 : vector<1x512xi32>
    %c0_i32_8 = arith.constant 0 : i32
    %35 = vector.broadcast %c0_i32_8 : i32 to vector<1x512xi32>
    %36 = arith.cmpi sge, %34, %35 : vector<1x512xi32>
    %c-1_i32_9 = arith.constant -1 : i32
    %37 = vector.broadcast %c-1_i32_9 : i32 to vector<1x512xi32>
    %38 = arith.addi %5, %37 : vector<1x512xi32>
    %c16_i32_10 = arith.constant 16 : i32
    %39 = vector.broadcast %c16_i32_10 : i32 to vector<1x512xi32>
    %40 = arith.cmpi slt, %38, %39 : vector<1x512xi32>
    %41 = arith.andi %36, %40 : vector<1x512xi1>
    %c0_i32_11 = arith.constant 0 : i32
    %42 = vector.broadcast %c0_i32_11 : i32 to vector<1x512xi32>
    %43 = arith.addi %7, %42 : vector<1x512xi32>
    %c0_i32_12 = arith.constant 0 : i32
    %44 = vector.broadcast %c0_i32_12 : i32 to vector<1x512xi32>
    %45 = arith.cmpi sge, %43, %44 : vector<1x512xi32>
    %46 = arith.andi %41, %45 : vector<1x512xi1>
    %c0_i32_13 = arith.constant 0 : i32
    %47 = vector.broadcast %c0_i32_13 : i32 to vector<1x512xi32>
    %48 = arith.addi %7, %47 : vector<1x512xi32>
    %c16_i32_14 = arith.constant 16 : i32
    %49 = vector.broadcast %c16_i32_14 : i32 to vector<1x512xi32>
    %50 = arith.cmpi slt, %48, %49 : vector<1x512xi32>
    %51 = arith.andi %46, %50 : vector<1x512xi1>
    %cst_15 = arith.constant 0.000000e+00 : f32
    %52 = vector.shape_cast %51 : vector<1x512xi1> to vector<1x512xi1>
    %53 = vector.broadcast %52 : vector<1x512xi1> to vector<4x512xi1>
    %54 = vector.broadcast %cst_15 : f32 to vector<4x512xf32>
    %55 = arith.select %53, %32, %54 : vector<4x512xi1>, vector<4x512xf32>
    %c15_i32_16 = arith.constant 15 : i32
    %56 = tpu.dynamic_rotate %0 by %c15_i32_16 dim 1 : vector<4x512xf32>, i32 -> vector<4x512xf32>
    %c-1_i32_17 = arith.constant -1 : i32
    %57 = vector.broadcast %c-1_i32_17 : i32 to vector<1x512xi32>
    %58 = arith.addi %5, %57 : vector<1x512xi32>
    %c0_i32_18 = arith.constant 0 : i32
    %59 = vector.broadcast %c0_i32_18 : i32 to vector<1x512xi32>
    %60 = arith.cmpi sge, %58, %59 : vector<1x512xi32>
    %c-1_i32_19 = arith.constant -1 : i32
    %61 = vector.broadcast %c-1_i32_19 : i32 to vector<1x512xi32>
    %62 = arith.addi %5, %61 : vector<1x512xi32>
    %c16_i32_20 = arith.constant 16 : i32
    %63 = vector.broadcast %c16_i32_20 : i32 to vector<1x512xi32>
    %64 = arith.cmpi slt, %62, %63 : vector<1x512xi32>
    %65 = arith.andi %60, %64 : vector<1x512xi1>
    %c1_i32 = arith.constant 1 : i32
    %66 = vector.broadcast %c1_i32 : i32 to vector<1x512xi32>
    %67 = arith.addi %7, %66 : vector<1x512xi32>
    %c0_i32_21 = arith.constant 0 : i32
    %68 = vector.broadcast %c0_i32_21 : i32 to vector<1x512xi32>
    %69 = arith.cmpi sge, %67, %68 : vector<1x512xi32>
    %70 = arith.andi %65, %69 : vector<1x512xi1>
    %c1_i32_22 = arith.constant 1 : i32
    %71 = vector.broadcast %c1_i32_22 : i32 to vector<1x512xi32>
    %72 = arith.addi %7, %71 : vector<1x512xi32>
    %c16_i32_23 = arith.constant 16 : i32
    %73 = vector.broadcast %c16_i32_23 : i32 to vector<1x512xi32>
    %74 = arith.cmpi slt, %72, %73 : vector<1x512xi32>
    %75 = arith.andi %70, %74 : vector<1x512xi1>
    %cst_24 = arith.constant 0.000000e+00 : f32
    %76 = vector.shape_cast %75 : vector<1x512xi1> to vector<1x512xi1>
    %77 = vector.broadcast %76 : vector<1x512xi1> to vector<4x512xi1>
    %78 = vector.broadcast %cst_24 : f32 to vector<4x512xf32>
    %79 = arith.select %77, %56, %78 : vector<4x512xi1>, vector<4x512xf32>
    %c1_i32_25 = arith.constant 1 : i32
    %80 = tpu.dynamic_rotate %0 by %c1_i32_25 dim 1 : vector<4x512xf32>, i32 -> vector<4x512xf32>
    %c0_i32_26 = arith.constant 0 : i32
    %81 = vector.broadcast %c0_i32_26 : i32 to vector<1x512xi32>
    %82 = arith.addi %5, %81 : vector<1x512xi32>
    %c0_i32_27 = arith.constant 0 : i32
    %83 = vector.broadcast %c0_i32_27 : i32 to vector<1x512xi32>
    %84 = arith.cmpi sge, %82, %83 : vector<1x512xi32>
    %c0_i32_28 = arith.constant 0 : i32
    %85 = vector.broadcast %c0_i32_28 : i32 to vector<1x512xi32>
    %86 = arith.addi %5, %85 : vector<1x512xi32>
    %c16_i32_29 = arith.constant 16 : i32
    %87 = vector.broadcast %c16_i32_29 : i32 to vector<1x512xi32>
    %88 = arith.cmpi slt, %86, %87 : vector<1x512xi32>
    %89 = arith.andi %84, %88 : vector<1x512xi1>
    %c-1_i32_30 = arith.constant -1 : i32
    %90 = vector.broadcast %c-1_i32_30 : i32 to vector<1x512xi32>
    %91 = arith.addi %7, %90 : vector<1x512xi32>
    %c0_i32_31 = arith.constant 0 : i32
    %92 = vector.broadcast %c0_i32_31 : i32 to vector<1x512xi32>
    %93 = arith.cmpi sge, %91, %92 : vector<1x512xi32>
    %94 = arith.andi %89, %93 : vector<1x512xi1>
    %c-1_i32_32 = arith.constant -1 : i32
    %95 = vector.broadcast %c-1_i32_32 : i32 to vector<1x512xi32>
    %96 = arith.addi %7, %95 : vector<1x512xi32>
    %c16_i32_33 = arith.constant 16 : i32
    %97 = vector.broadcast %c16_i32_33 : i32 to vector<1x512xi32>
    %98 = arith.cmpi slt, %96, %97 : vector<1x512xi32>
    %99 = arith.andi %94, %98 : vector<1x512xi1>
    %cst_34 = arith.constant 0.000000e+00 : f32
    %100 = vector.shape_cast %99 : vector<1x512xi1> to vector<1x512xi1>
    %101 = vector.broadcast %100 : vector<1x512xi1> to vector<4x512xi1>
    %102 = vector.broadcast %cst_34 : f32 to vector<4x512xf32>
    %103 = arith.select %101, %80, %102 : vector<4x512xi1>, vector<4x512xf32>
    %c0_i32_35 = arith.constant 0 : i32
    %104 = vector.broadcast %c0_i32_35 : i32 to vector<1x512xi32>
    %105 = arith.addi %5, %104 : vector<1x512xi32>
    %c0_i32_36 = arith.constant 0 : i32
    %106 = vector.broadcast %c0_i32_36 : i32 to vector<1x512xi32>
    %107 = arith.cmpi sge, %105, %106 : vector<1x512xi32>
    %c0_i32_37 = arith.constant 0 : i32
    %108 = vector.broadcast %c0_i32_37 : i32 to vector<1x512xi32>
    %109 = arith.addi %5, %108 : vector<1x512xi32>
    %c16_i32_38 = arith.constant 16 : i32
    %110 = vector.broadcast %c16_i32_38 : i32 to vector<1x512xi32>
    %111 = arith.cmpi slt, %109, %110 : vector<1x512xi32>
    %112 = arith.andi %107, %111 : vector<1x512xi1>
    %c0_i32_39 = arith.constant 0 : i32
    %113 = vector.broadcast %c0_i32_39 : i32 to vector<1x512xi32>
    %114 = arith.addi %7, %113 : vector<1x512xi32>
    %c0_i32_40 = arith.constant 0 : i32
    %115 = vector.broadcast %c0_i32_40 : i32 to vector<1x512xi32>
    %116 = arith.cmpi sge, %114, %115 : vector<1x512xi32>
    %117 = arith.andi %112, %116 : vector<1x512xi1>
    %c0_i32_41 = arith.constant 0 : i32
    %118 = vector.broadcast %c0_i32_41 : i32 to vector<1x512xi32>
    %119 = arith.addi %7, %118 : vector<1x512xi32>
    %c16_i32_42 = arith.constant 16 : i32
    %120 = vector.broadcast %c16_i32_42 : i32 to vector<1x512xi32>
    %121 = arith.cmpi slt, %119, %120 : vector<1x512xi32>
    %122 = arith.andi %117, %121 : vector<1x512xi1>
    %cst_43 = arith.constant 0.000000e+00 : f32
    %123 = vector.shape_cast %122 : vector<1x512xi1> to vector<1x512xi1>
    %124 = vector.broadcast %123 : vector<1x512xi1> to vector<4x512xi1>
    %125 = vector.broadcast %cst_43 : f32 to vector<4x512xf32>
    %126 = arith.select %124, %0, %125 : vector<4x512xi1>, vector<4x512xf32>
    %c511_i32 = arith.constant 511 : i32
    %127 = tpu.dynamic_rotate %0 by %c511_i32 dim 1 : vector<4x512xf32>, i32 -> vector<4x512xf32>
    %c0_i32_44 = arith.constant 0 : i32
    %128 = vector.broadcast %c0_i32_44 : i32 to vector<1x512xi32>
    %129 = arith.addi %5, %128 : vector<1x512xi32>
    %c0_i32_45 = arith.constant 0 : i32
    %130 = vector.broadcast %c0_i32_45 : i32 to vector<1x512xi32>
    %131 = arith.cmpi sge, %129, %130 : vector<1x512xi32>
    %c0_i32_46 = arith.constant 0 : i32
    %132 = vector.broadcast %c0_i32_46 : i32 to vector<1x512xi32>
    %133 = arith.addi %5, %132 : vector<1x512xi32>
    %c16_i32_47 = arith.constant 16 : i32
    %134 = vector.broadcast %c16_i32_47 : i32 to vector<1x512xi32>
    %135 = arith.cmpi slt, %133, %134 : vector<1x512xi32>
    %136 = arith.andi %131, %135 : vector<1x512xi1>
    %c1_i32_48 = arith.constant 1 : i32
    %137 = vector.broadcast %c1_i32_48 : i32 to vector<1x512xi32>
    %138 = arith.addi %7, %137 : vector<1x512xi32>
    %c0_i32_49 = arith.constant 0 : i32
    %139 = vector.broadcast %c0_i32_49 : i32 to vector<1x512xi32>
    %140 = arith.cmpi sge, %138, %139 : vector<1x512xi32>
    %141 = arith.andi %136, %140 : vector<1x512xi1>
    %c1_i32_50 = arith.constant 1 : i32
    %142 = vector.broadcast %c1_i32_50 : i32 to vector<1x512xi32>
    %143 = arith.addi %7, %142 : vector<1x512xi32>
    %c16_i32_51 = arith.constant 16 : i32
    %144 = vector.broadcast %c16_i32_51 : i32 to vector<1x512xi32>
    %145 = arith.cmpi slt, %143, %144 : vector<1x512xi32>
    %146 = arith.andi %141, %145 : vector<1x512xi1>
    %cst_52 = arith.constant 0.000000e+00 : f32
    %147 = vector.shape_cast %146 : vector<1x512xi1> to vector<1x512xi1>
    %148 = vector.broadcast %147 : vector<1x512xi1> to vector<4x512xi1>
    %149 = vector.broadcast %cst_52 : f32 to vector<4x512xf32>
    %150 = arith.select %148, %127, %149 : vector<4x512xi1>, vector<4x512xf32>
    %c497_i32 = arith.constant 497 : i32
    %151 = tpu.dynamic_rotate %0 by %c497_i32 dim 1 : vector<4x512xf32>, i32 -> vector<4x512xf32>
    %c1_i32_53 = arith.constant 1 : i32
    %152 = vector.broadcast %c1_i32_53 : i32 to vector<1x512xi32>
    %153 = arith.addi %5, %152 : vector<1x512xi32>
    %c0_i32_54 = arith.constant 0 : i32
    %154 = vector.broadcast %c0_i32_54 : i32 to vector<1x512xi32>
    %155 = arith.cmpi sge, %153, %154 : vector<1x512xi32>
    %c1_i32_55 = arith.constant 1 : i32
    %156 = vector.broadcast %c1_i32_55 : i32 to vector<1x512xi32>
    %157 = arith.addi %5, %156 : vector<1x512xi32>
    %c16_i32_56 = arith.constant 16 : i32
    %158 = vector.broadcast %c16_i32_56 : i32 to vector<1x512xi32>
    %159 = arith.cmpi slt, %157, %158 : vector<1x512xi32>
    %160 = arith.andi %155, %159 : vector<1x512xi1>
    %c-1_i32_57 = arith.constant -1 : i32
    %161 = vector.broadcast %c-1_i32_57 : i32 to vector<1x512xi32>
    %162 = arith.addi %7, %161 : vector<1x512xi32>
    %c0_i32_58 = arith.constant 0 : i32
    %163 = vector.broadcast %c0_i32_58 : i32 to vector<1x512xi32>
    %164 = arith.cmpi sge, %162, %163 : vector<1x512xi32>
    %165 = arith.andi %160, %164 : vector<1x512xi1>
    %c-1_i32_59 = arith.constant -1 : i32
    %166 = vector.broadcast %c-1_i32_59 : i32 to vector<1x512xi32>
    %167 = arith.addi %7, %166 : vector<1x512xi32>
    %c16_i32_60 = arith.constant 16 : i32
    %168 = vector.broadcast %c16_i32_60 : i32 to vector<1x512xi32>
    %169 = arith.cmpi slt, %167, %168 : vector<1x512xi32>
    %170 = arith.andi %165, %169 : vector<1x512xi1>
    %cst_61 = arith.constant 0.000000e+00 : f32
    %171 = vector.shape_cast %170 : vector<1x512xi1> to vector<1x512xi1>
    %172 = vector.broadcast %171 : vector<1x512xi1> to vector<4x512xi1>
    %173 = vector.broadcast %cst_61 : f32 to vector<4x512xf32>
    %174 = arith.select %172, %151, %173 : vector<4x512xi1>, vector<4x512xf32>
    %c496_i32 = arith.constant 496 : i32
    %175 = tpu.dynamic_rotate %0 by %c496_i32 dim 1 : vector<4x512xf32>, i32 -> vector<4x512xf32>
    %c1_i32_62 = arith.constant 1 : i32
    %176 = vector.broadcast %c1_i32_62 : i32 to vector<1x512xi32>
    %177 = arith.addi %5, %176 : vector<1x512xi32>
    %c0_i32_63 = arith.constant 0 : i32
    %178 = vector.broadcast %c0_i32_63 : i32 to vector<1x512xi32>
    %179 = arith.cmpi sge, %177, %178 : vector<1x512xi32>
    %c1_i32_64 = arith.constant 1 : i32
    %180 = vector.broadcast %c1_i32_64 : i32 to vector<1x512xi32>
    %181 = arith.addi %5, %180 : vector<1x512xi32>
    %c16_i32_65 = arith.constant 16 : i32
    %182 = vector.broadcast %c16_i32_65 : i32 to vector<1x512xi32>
    %183 = arith.cmpi slt, %181, %182 : vector<1x512xi32>
    %184 = arith.andi %179, %183 : vector<1x512xi1>
    %c0_i32_66 = arith.constant 0 : i32
    %185 = vector.broadcast %c0_i32_66 : i32 to vector<1x512xi32>
    %186 = arith.addi %7, %185 : vector<1x512xi32>
    %c0_i32_67 = arith.constant 0 : i32
    %187 = vector.broadcast %c0_i32_67 : i32 to vector<1x512xi32>
    %188 = arith.cmpi sge, %186, %187 : vector<1x512xi32>
    %189 = arith.andi %184, %188 : vector<1x512xi1>
    %c0_i32_68 = arith.constant 0 : i32
    %190 = vector.broadcast %c0_i32_68 : i32 to vector<1x512xi32>
    %191 = arith.addi %7, %190 : vector<1x512xi32>
    %c16_i32_69 = arith.constant 16 : i32
    %192 = vector.broadcast %c16_i32_69 : i32 to vector<1x512xi32>
    %193 = arith.cmpi slt, %191, %192 : vector<1x512xi32>
    %194 = arith.andi %189, %193 : vector<1x512xi1>
    %cst_70 = arith.constant 0.000000e+00 : f32
    %195 = vector.shape_cast %194 : vector<1x512xi1> to vector<1x512xi1>
    %196 = vector.broadcast %195 : vector<1x512xi1> to vector<4x512xi1>
    %197 = vector.broadcast %cst_70 : f32 to vector<4x512xf32>
    %198 = arith.select %196, %175, %197 : vector<4x512xi1>, vector<4x512xf32>
    %c495_i32 = arith.constant 495 : i32
    %199 = tpu.dynamic_rotate %0 by %c495_i32 dim 1 : vector<4x512xf32>, i32 -> vector<4x512xf32>
    %c1_i32_71 = arith.constant 1 : i32
    %200 = vector.broadcast %c1_i32_71 : i32 to vector<1x512xi32>
    %201 = arith.addi %5, %200 : vector<1x512xi32>
    %c0_i32_72 = arith.constant 0 : i32
    %202 = vector.broadcast %c0_i32_72 : i32 to vector<1x512xi32>
    %203 = arith.cmpi sge, %201, %202 : vector<1x512xi32>
    %c1_i32_73 = arith.constant 1 : i32
    %204 = vector.broadcast %c1_i32_73 : i32 to vector<1x512xi32>
    %205 = arith.addi %5, %204 : vector<1x512xi32>
    %c16_i32_74 = arith.constant 16 : i32
    %206 = vector.broadcast %c16_i32_74 : i32 to vector<1x512xi32>
    %207 = arith.cmpi slt, %205, %206 : vector<1x512xi32>
    %208 = arith.andi %203, %207 : vector<1x512xi1>
    %c1_i32_75 = arith.constant 1 : i32
    %209 = vector.broadcast %c1_i32_75 : i32 to vector<1x512xi32>
    %210 = arith.addi %7, %209 : vector<1x512xi32>
    %c0_i32_76 = arith.constant 0 : i32
    %211 = vector.broadcast %c0_i32_76 : i32 to vector<1x512xi32>
    %212 = arith.cmpi sge, %210, %211 : vector<1x512xi32>
    %213 = arith.andi %208, %212 : vector<1x512xi1>
    %c1_i32_77 = arith.constant 1 : i32
    %214 = vector.broadcast %c1_i32_77 : i32 to vector<1x512xi32>
    %215 = arith.addi %7, %214 : vector<1x512xi32>
    %c16_i32_78 = arith.constant 16 : i32
    %216 = vector.broadcast %c16_i32_78 : i32 to vector<1x512xi32>
    %217 = arith.cmpi slt, %215, %216 : vector<1x512xi32>
    %218 = arith.andi %213, %217 : vector<1x512xi1>
    %cst_79 = arith.constant 0.000000e+00 : f32
    %219 = vector.shape_cast %218 : vector<1x512xi1> to vector<1x512xi1>
    %220 = vector.broadcast %219 : vector<1x512xi1> to vector<4x512xi1>
    %221 = vector.broadcast %cst_79 : f32 to vector<4x512xf32>
    %222 = arith.select %220, %199, %221 : vector<4x512xi1>, vector<4x512xf32>
    %223 = tpu.concatenate %31, %55, %79, %103, %126, %150, %174, %198, %222 in 0 : vector<4x512xf32>, vector<4x512xf32>, vector<4x512xf32>, vector<4x512xf32>, vector<4x512xf32>, vector<4x512xf32>, vector<4x512xf32>, vector<4x512xf32>, vector<4x512xf32> -> vector<36x512xf32>
    %c0_80 = arith.constant 0 : index
    %c0_81 = arith.constant 0 : index
    %224 = vector.load %arg2[%c0_80, %c0_81] : memref<8x36xf32, #tpu.memory_space<vmem>>, vector<8x36xf32>
    %cst_82 = arith.constant dense<0.000000e+00> : vector<8x512xf32>
    %225 = tpu.matmul %224, %223, %cst_82 {dimension_numbers = #tpu.dot_dimension_numbers<[1], [0], [0], [1], [0, 0, 1, 1], [], []>} : vector<8x36xf32>, vector<36x512xf32>, vector<8x512xf32> -> vector<8x512xf32>
    %c0_83 = arith.constant 0 : index
    %c0_84 = arith.constant 0 : index
    %226 = vector.load %arg3[%c0_83, %c0_84] : memref<8x1xf32, #tpu.memory_space<vmem>>, vector<8x1xf32>
    %227 = vector.broadcast %226 : vector<8x1xf32> to vector<8x512xf32>
    %228 = arith.addf %225, %227 : vector<8x512xf32>
    %c0_85 = arith.constant 0 : index
    %c0_86 = arith.constant 0 : index
    %229 = vector.load %arg4[%c0_85, %c0_86] : memref<8x10xf32, #tpu.memory_space<vmem>>, vector<8x10xf32>
    %c0_87 = arith.constant 0 : index
    %c0_88 = arith.constant 0 : index
    %230 = vector.load %arg5[%c0_87, %c0_88] : memref<1x10xf32, #tpu.memory_space<vmem>>, vector<1x10xf32>
    %231 = vector.extract_strided_slice %228 {offsets = [0, 0], sizes = [8, 256], strides = [1, 1]} : vector<8x512xf32> to vector<8x256xf32>
    %c0_89 = arith.constant 0 : index
    %c0_90 = arith.constant 0 : index
    %c0_91 = arith.constant 0 : index
    %232 = vector.load %arg6[%c0_89, %c0_90, %c0_91] : memref<2x8x256xf32, #tpu.memory_space<vmem>>, vector<1x8x256xf32>
    %233 = vector.shape_cast %232 : vector<1x8x256xf32> to vector<8x256xf32>
    %234 = vector.shape_cast %231 : vector<8x256xf32> to vector<1x8x256xf32>
    tpu.vector_store %arg6[%c0_89, %c0_90, %c0_91], %234 {strides = array<i32>} : memref<2x8x256xf32, #tpu.memory_space<vmem>>, vector<1x8x256xf32>,
    %cst_92 = arith.constant 0.000000e+00 : f32
    %235 = vector.broadcast %cst_92 : f32 to vector<8x256xf32>
    %236 = arith.maximumf %231, %235 : vector<8x256xf32>
    %cst_93 = arith.constant dense<0.000000e+00> : vector<8xf32>
    %237 = vector.multi_reduction <add>, %236, %cst_93 [1] : vector<8x256xf32> to vector<8xf32>
    %238 = vector.shape_cast %237 : vector<8xf32> to vector<8x1xf32>
    %cst_94 = arith.constant 2.560000e+02 : f32
    %239 = vector.broadcast %cst_94 : f32 to vector<8x1xf32>
    %240 = arith.divf %238, %239 : vector<8x1xf32>
    %c0_95 = arith.constant 0 : index
    %c0_96 = arith.constant 0 : index
    %c0_97 = arith.constant 0 : index
    %241 = vector.load %arg7[%c0_95, %c0_96, %c0_97] : memref<2x8x1xf32, #tpu.memory_space<vmem>>, vector<1x8x1xf32>
    %242 = vector.shape_cast %241 : vector<1x8x1xf32> to vector<8x1xf32>
    %243 = vector.shape_cast %240 : vector<8x1xf32> to vector<1x8x1xf32>
    tpu.vector_store %arg7[%c0_95, %c0_96, %c0_97], %243 {strides = array<i32>} : memref<2x8x1xf32, #tpu.memory_space<vmem>>, vector<1x8x1xf32>,
    %244 = vector.broadcast %240 : vector<8x1xf32> to vector<8x10xf32>
    %245 = arith.mulf %244, %229 : vector<8x10xf32>
    %cst_98 = arith.constant dense<0.000000e+00> : vector<10xf32>
    %246 = vector.multi_reduction <add>, %245, %cst_98 [0] : vector<8x10xf32> to vector<10xf32>
    %247 = vector.shape_cast %246 : vector<10xf32> to vector<1x10xf32>
    %248 = arith.addf %247, %230 : vector<1x10xf32>
    %c0_99 = arith.constant 0 : index
    %c0_100 = arith.constant 0 : index
    %c0_101 = arith.constant 0 : index
    %249 = vector.load %arg8[%c0_99, %c0_100, %c0_101] : memref<2x1x10xf32, #tpu.memory_space<vmem>>, vector<1x1x10xf32>
    %250 = vector.shape_cast %249 : vector<1x1x10xf32> to vector<1x10xf32>
    %251 = vector.shape_cast %248 : vector<1x10xf32> to vector<1x1x10xf32>
    tpu.vector_store %arg8[%c0_99, %c0_100, %c0_101], %251 {strides = array<i32>} : memref<2x1x10xf32, #tpu.memory_space<vmem>>, vector<1x1x10xf32>,
    %252 = vector.extract_strided_slice %228 {offsets = [0, 256], sizes = [8, 256], strides = [1, 1]} : vector<8x512xf32> to vector<8x256xf32>
    %c1 = arith.constant 1 : index
    %c0_102 = arith.constant 0 : index
    %c0_103 = arith.constant 0 : index
    %253 = vector.load %arg6[%c1, %c0_102, %c0_103] : memref<2x8x256xf32, #tpu.memory_space<vmem>>, vector<1x8x256xf32>
    %254 = vector.shape_cast %253 : vector<1x8x256xf32> to vector<8x256xf32>
    %255 = vector.shape_cast %252 : vector<8x256xf32> to vector<1x8x256xf32>
    tpu.vector_store %arg6[%c1, %c0_102, %c0_103], %255 {strides = array<i32>} : memref<2x8x256xf32, #tpu.memory_space<vmem>>, vector<1x8x256xf32>,
    %cst_104 = arith.constant 0.000000e+00 : f32
    %256 = vector.broadcast %cst_104 : f32 to vector<8x256xf32>
    %257 = arith.maximumf %252, %256 : vector<8x256xf32>
    %cst_105 = arith.constant dense<0.000000e+00> : vector<8xf32>
    %258 = vector.multi_reduction <add>, %257, %cst_105 [1] : vector<8x256xf32> to vector<8xf32>
    %259 = vector.shape_cast %258 : vector<8xf32> to vector<8x1xf32>
    %cst_106 = arith.constant 2.560000e+02 : f32
    %260 = vector.broadcast %cst_106 : f32 to vector<8x1xf32>
    %261 = arith.divf %259, %260 : vector<8x1xf32>
    %c1_107 = arith.constant 1 : index
    %c0_108 = arith.constant 0 : index
    %c0_109 = arith.constant 0 : index
    %262 = vector.load %arg7[%c1_107, %c0_108, %c0_109] : memref<2x8x1xf32, #tpu.memory_space<vmem>>, vector<1x8x1xf32>
    %263 = vector.shape_cast %262 : vector<1x8x1xf32> to vector<8x1xf32>
    %264 = vector.shape_cast %261 : vector<8x1xf32> to vector<1x8x1xf32>
    tpu.vector_store %arg7[%c1_107, %c0_108, %c0_109], %264 {strides = array<i32>} : memref<2x8x1xf32, #tpu.memory_space<vmem>>, vector<1x8x1xf32>,
    %265 = vector.broadcast %261 : vector<8x1xf32> to vector<8x10xf32>
    %266 = arith.mulf %265, %229 : vector<8x10xf32>
    %cst_110 = arith.constant dense<0.000000e+00> : vector<10xf32>
    %267 = vector.multi_reduction <add>, %266, %cst_110 [0] : vector<8x10xf32> to vector<10xf32>
    %268 = vector.shape_cast %267 : vector<10xf32> to vector<1x10xf32>
    %269 = arith.addf %268, %230 : vector<1x10xf32>
    %c1_111 = arith.constant 1 : index
    %c0_112 = arith.constant 0 : index
    %c0_113 = arith.constant 0 : index
    %270 = vector.load %arg8[%c1_111, %c0_112, %c0_113] : memref<2x1x10xf32, #tpu.memory_space<vmem>>, vector<1x1x10xf32>
    %271 = vector.shape_cast %270 : vector<1x1x10xf32> to vector<1x10xf32>
    %272 = vector.shape_cast %269 : vector<1x10xf32> to vector<1x1x10xf32>
    tpu.vector_store %arg8[%c1_111, %c0_112, %c0_113], %272 {strides = array<i32>} : memref<2x1x10xf32, #tpu.memory_space<vmem>>, vector<1x1x10xf32>,
    return
  }
  func.func @transform_0(%arg0: i32) -> (i32, i32) {
    %c0_i32 = arith.constant 0 : i32
    %c0_i32_0 = arith.constant 0 : i32
    return %c0_i32, %arg0 : i32, i32
  }
  func.func @transform_1(%arg0: i32) -> (i32, i32) {
    %c0_i32 = arith.constant 0 : i32
    %c0_i32_0 = arith.constant 0 : i32
    %c0_i32_1 = arith.constant 0 : i32
    return %c0_i32, %c0_i32_0 : i32, i32
  }
  func.func @transform_2(%arg0: i32) -> (i32, i32) {
    %c0_i32 = arith.constant 0 : i32
    %c0_i32_0 = arith.constant 0 : i32
    %c0_i32_1 = arith.constant 0 : i32
    return %c0_i32, %c0_i32_0 : i32, i32
  }
  func.func @transform_3(%arg0: i32) -> (i32, i32) {
    %c0_i32 = arith.constant 0 : i32
    %c0_i32_0 = arith.constant 0 : i32
    %c0_i32_1 = arith.constant 0 : i32
    return %c0_i32, %c0_i32_0 : i32, i32
  }
  func.func @transform_4(%arg0: i32) -> (i32, i32) {
    %c0_i32 = arith.constant 0 : i32
    %c0_i32_0 = arith.constant 0 : i32
    %c0_i32_1 = arith.constant 0 : i32
    return %c0_i32, %c0_i32_0 : i32, i32
  }
  func.func @transform_5(%arg0: i32) -> (i32, i32, i32) {
    %c0_i32 = arith.constant 0 : i32
    %c0_i32_0 = arith.constant 0 : i32
    %c0_i32_1 = arith.constant 0 : i32
    return %arg0, %c0_i32, %c0_i32_0 : i32, i32, i32
  }
  func.func @transform_6(%arg0: i32) -> (i32, i32, i32) {
    %c0_i32 = arith.constant 0 : i32
    %c0_i32_0 = arith.constant 0 : i32
    %c0_i32_1 = arith.constant 0 : i32
    return %arg0, %c0_i32, %c0_i32_0 : i32, i32, i32
  }
  func.func @transform_7(%arg0: i32) -> (i32, i32, i32) {
    %c0_i32 = arith.constant 0 : i32
    %c0_i32_0 = arith.constant 0 : i32
    %c0_i32_1 = arith.constant 0 : i32
    return %arg0, %c0_i32, %c0_i32_0 : i32, i32, i32
  }
}

</mosaic_0001>

<llo_original>
// kernel: fused_forward.1
$region0: #{fused_forward.1}
  #allocation0 [shape = 'u32[]', space=smem, size = 0x4, offset = 0x4, fixed_abs, tag = 'smem constant byte address 0x4 - core index']
  #allocation1 [shape = 'u32[144,128]{1,0:T(1,128)}', space=vmem, size = 0x12000, scoped, tag = 'internal scratch']
  %s0 = inlined_call_operand.vmem [shape: f32[4,512], index: 0, kind: input, shape index: {}]
  %s1 = inlined_call_operand.vmem [shape: f32[8,36], index: 1, kind: input, shape index: {}]
  %s2 = inlined_call_operand.vmem [shape: f32[8,1], index: 2, kind: input, shape index: {}]
  %s3 = inlined_call_operand.vmem [shape: f32[8,10], index: 3, kind: input, shape index: {}]
  %s4 = inlined_call_operand.vmem [shape: f32[1,10], index: 4, kind: input, shape index: {}]
  %s5 = inlined_call_operand.vmem [shape: f32[2,8,256], index: 5, kind: output, shape index: {0}]
  %s6 = inlined_call_operand.vmem [shape: f32[2,8,1], index: 6, kind: output, shape index: {1}]
  %s7 = inlined_call_operand.hbm [shape: f32[2,1,10], index: 7, kind: output, shape index: {2}]
  %8 = xla_tuple %s5, %s6, %s7
  %s9 = sld [smem:[#allocation0]]
  $region46: #{fused_forward.1} parent=0
    _
  %s11 = ssub.s32 1, %s9
  %s12 = scalar_select 0, %s11, %s9
  $region1: #{fused_forward.1} parent=0
    #allocation2 [shape = 'u8[1024]{0}', space=vmem, size = 0x400, scoped, tag = 'output window, operand 2, single buffered']
    #allocation3 [shape = 's32[1]{0}', space=sflag, size = 0x4, scoped, tag = 'scoped memory for fused_forward.1']
    %13 = vsyncpa [#allocation3], 0
    // Predicated region
    $region2: #{fused_forward.1} parent=1 // pred_check
      _
    $region3: #{fused_forward.1} parent=1 // pred_check_branch
      %15 = sbr.rel (0) target = $region5
    $region4: #{fused_forward.1} parent=1 // pred_region
      _
    $region5: #{fused_forward.1} parent=1 // pred_fallthru
      _
    // Predicated region
    $region6: #{fused_forward.1} parent=1 // pred_check
      _
    $region7: #{fused_forward.1} parent=1 // pred_check_branch
      %17 = sbr.rel (0) target = $region9
    $region8: #{fused_forward.1} parent=1 // pred_region
      _
    $region9: #{fused_forward.1} parent=1 // pred_fallthru
      _
    // Predicated region
    $region10: #{fused_forward.1} parent=1 // pred_check
      _
    $region11: #{fused_forward.1} parent=1 // pred_check_branch
      %19 = sbr.rel (0) target = $region13
    $region12: #{fused_forward.1} parent=1 // pred_region
      _
    $region13: #{fused_forward.1} parent=1 // pred_fallthru
      _
    // Predicated region
    $region14: #{fused_forward.1} parent=1 // pred_check
      _
    $region15: #{fused_forward.1} parent=1 // pred_check_branch
      %21 = sbr.rel (0) target = $region17
    $region16: #{fused_forward.1} parent=1 // pred_region
      _
    $region17: #{fused_forward.1} parent=1 // pred_fallthru
      _
    // Predicated region
    $region18: #{fused_forward.1} parent=1 // pred_check
      _
    $region19: #{fused_forward.1} parent=1 // pred_check_branch
      %23 = sbr.rel (0) target = $region21
    $region20: #{fused_forward.1} parent=1 // pred_region
      _
    $region21: #{fused_forward.1} parent=1 // pred_fallthru
      _
    %v24 = vld [vmem:[%s0] sm:$0xff]
    %v25 = vld [vmem:[%s0 + $0x8] sm:$0xff]
    %v26 = vlaneseq
    %v27 = vand.u32 %v26, 127
    %v28 = vadd.s32 %v27, 128
    %v29 = vadd.s32 %v27, 256
    %v30 = vadd.s32 %v27, 384
    %v31 = vand.u32 %v27, 255
    %v32 = vand.u32 %v28, 255
    %v33 = vand.u32 %v29, 255
    %v34 = vand.u32 %v30, 255
    %v35 = vshra.s32 %v31, 4
    %v36 = vshra.s32 %v32, 4
    %v37 = vshra.s32 %v33, 4
    %v38 = vshra.s32 %v34, 4
    %v39 = vand.u32 %v31, 15
    %v40 = vand.u32 %v32, 15
    %v41 = vand.u32 %v33, 15
    %v42 = vand.u32 %v34, 15
    %v45 = vcombine.high %v24, %v24
    %v46 = vcombine.high %v25, %v25
    %49 = vrot.lane.b32.xlu0 %v24, 17
    %v50 = vpop.permute.xlu0 %49
    %51 = vrot.lane.b32.xlu0 %v45, 17
    %v52 = vpop.permute.xlu0 %51
    %53 = vrot.lane.b32.xlu0 %v25, 17
    %v54 = vpop.permute.xlu0 %53
    %55 = vrot.lane.b32.xlu0 %v46, 17
    %v56 = vpop.permute.xlu0 %55
    %vm57 = vcmp.lt.s32.totalorder %v27, 17
    %v58 = vsel %vm57, %v54, %v56
    %v59 = vsel %vm57, %v52, %v54
    %v60 = vsel %vm57, %v50, %v52
    %v61 = vsel %vm57, %v56, %v50
    %v62 = vadd.s32 %v35, 4294967295
    %v63 = vadd.s32 %v36, 4294967295
    %v64 = vadd.s32 %v37, 4294967295
    %v65 = vadd.s32 %v38, 4294967295
    %vm66 = vcmp.ge.s32.totalorder %v62, 0
    %vm67 = vcmp.ge.s32.totalorder %v63, 0
    %vm68 = vcmp.ge.s32.totalorder %v64, 0
    %vm69 = vcmp.ge.s32.totalorder %v65, 0
    %vm70 = vcmp.lt.s32.totalorder %v62, 16
    %vm71 = vcmp.lt.s32.totalorder %v63, 16
    %vm72 = vcmp.lt.s32.totalorder %v64, 16
    %vm73 = vcmp.lt.s32.totalorder %v65, 16
    %vm74 = vmand %vm66, %vm70
    %vm75 = vmand %vm67, %vm71
    %vm76 = vmand %vm68, %vm72
    %vm77 = vmand %vm69, %vm73
    %v78 = vadd.s32 %v39, 4294967295
    %v79 = vadd.s32 %v40, 4294967295
    %v80 = vadd.s32 %v41, 4294967295
    %v81 = vadd.s32 %v42, 4294967295
    %vm82 = vcmp.ge.s32.totalorder %v78, 0
    %vm83 = vcmp.ge.s32.totalorder %v79, 0
    %vm84 = vcmp.ge.s32.totalorder %v80, 0
    %vm85 = vcmp.ge.s32.totalorder %v81, 0
    %vm86 = vmand %vm74, %vm82
    %vm87 = vmand %vm75, %vm83
    %vm88 = vmand %vm76, %vm84
    %vm89 = vmand %vm77, %vm85
    %vm90 = vcmp.lt.s32.totalorder %v78, 16
    %vm91 = vcmp.lt.s32.totalorder %v79, 16
    %vm92 = vcmp.lt.s32.totalorder %v80, 16
    %vm93 = vcmp.lt.s32.totalorder %v81, 16
    %vm94 = vmand %vm86, %vm90
    %vm95 = vmand %vm87, %vm91
    %vm96 = vmand %vm88, %vm92
    %vm97 = vmand %vm89, %vm93
    %v98 = vsel %vm94, 1, 0
    %v99 = vsel %vm95, 1, 0
    %v100 = vsel %vm96, 1, 0
    %v101 = vsel %vm97, 1, 0
    %vm102 = vcmp.eq.s32.totalorder %v98, 1
    %vm103 = vcmp.eq.s32.totalorder %v99, 1
    %vm104 = vcmp.eq.s32.totalorder %v100, 1
    %vm105 = vcmp.eq.s32.totalorder %v101, 1
    %v106 = vsel %vm102, %v61, 0.0
    %v107 = vsel %vm103, %v60, 0.0
    %v108 = vsel %vm104, %v59, 0.0
    %v109 = vsel %vm105, %v58, 0.0
    %110 = vrot.lane.b32.xlu0 %v24, 16
    %v111 = vpop.permute.xlu0 %110
    %112 = vrot.lane.b32.xlu0 %v45, 16
    %v113 = vpop.permute.xlu0 %112
    %114 = vrot.lane.b32.xlu0 %v25, 16
    %v115 = vpop.permute.xlu0 %114
    %116 = vrot.lane.b32.xlu0 %v46, 16
    %v117 = vpop.permute.xlu0 %116
    %vm118 = vcmp.lt.s32.totalorder %v27, 16
    %v119 = vsel %vm118, %v115, %v117
    %v120 = vsel %vm118, %v113, %v115
    %v121 = vsel %vm118, %v111, %v113
    %v122 = vsel %vm118, %v117, %v111
    %vm123 = vcmp.ge.s32.totalorder %v39, 0
    %vm124 = vcmp.ge.s32.totalorder %v40, 0
    %vm125 = vcmp.ge.s32.totalorder %v41, 0
    %vm126 = vcmp.ge.s32.totalorder %v42, 0
    %vm127 = vmand %vm74, %vm123
    %vm128 = vmand %vm75, %vm124
    %vm129 = vmand %vm76, %vm125
    %vm130 = vmand %vm77, %vm126
    %vm131 = vcmp.lt.s32.totalorder %v39, 16
    %vm132 = vcmp.lt.s32.totalorder %v40, 16
    %vm133 = vcmp.lt.s32.totalorder %v41, 16
    %vm134 = vcmp.lt.s32.totalorder %v42, 16
    %vm135 = vmand %vm127, %vm131
    %vm136 = vmand %vm128, %vm132
    %vm137 = vmand %vm129, %vm133
    %vm138 = vmand %vm130, %vm134
    %v139 = vsel %vm135, 1, 0
    %v140 = vsel %vm136, 1, 0
    %v141 = vsel %vm137, 1, 0
    %v142 = vsel %vm138, 1, 0
    %vm143 = vcmp.eq.s32.totalorder %v139, 1
    %vm144 = vcmp.eq.s32.totalorder %v140, 1
    %vm145 = vcmp.eq.s32.totalorder %v141, 1
    %vm146 = vcmp.eq.s32.totalorder %v142, 1
    %v147 = vsel %vm143, %v122, 0.0
    %v148 = vsel %vm144, %v121, 0.0
    %v149 = vsel %vm145, %v120, 0.0
    %v150 = vsel %vm146, %v119, 0.0
    %151 = vrot.lane.b32.xlu0 %v24, 15
    %v152 = vpop.permute.xlu0 %151
    %153 = vrot.lane.b32.xlu0 %v45, 15
    %v154 = vpop.permute.xlu0 %153
    %155 = vrot.lane.b32.xlu0 %v25, 15
    %v156 = vpop.permute.xlu0 %155
    %157 = vrot.lane.b32.xlu0 %v46, 15
    %v158 = vpop.permute.xlu0 %157
    %vm159 = vcmp.lt.s32.totalorder %v27, 15
    %v160 = vsel %vm159, %v156, %v158
    %v161 = vsel %vm159, %v154, %v156
    %v162 = vsel %vm159, %v152, %v154
    %v163 = vsel %vm159, %v158, %v152
    %v164 = vadd.s32 %v39, 1
    %v165 = vadd.s32 %v40, 1
    %v166 = vadd.s32 %v41, 1
    %v167 = vadd.s32 %v42, 1
    %vm168 = vcmp.ge.s32.totalorder %v164, 0
    %vm169 = vcmp.ge.s32.totalorder %v165, 0
    %vm170 = vcmp.ge.s32.totalorder %v166, 0
    %vm171 = vcmp.ge.s32.totalorder %v167, 0
    %vm172 = vmand %vm74, %vm168
    %vm173 = vmand %vm75, %vm169
    %vm174 = vmand %vm76, %vm170
    %vm175 = vmand %vm77, %vm171
    %vm176 = vcmp.lt.s32.totalorder %v164, 16
    %vm177 = vcmp.lt.s32.totalorder %v165, 16
    %vm178 = vcmp.lt.s32.totalorder %v166, 16
    %vm179 = vcmp.lt.s32.totalorder %v167, 16
    %vm180 = vmand %vm172, %vm176
    %vm181 = vmand %vm173, %vm177
    %vm182 = vmand %vm174, %vm178
    %vm183 = vmand %vm175, %vm179
    %v184 = vsel %vm180, 1, 0
    %v185 = vsel %vm181, 1, 0
    %v186 = vsel %vm182, 1, 0
    %v187 = vsel %vm183, 1, 0
    %vm188 = vcmp.eq.s32.totalorder %v184, 1
    %vm189 = vcmp.eq.s32.totalorder %v185, 1
    %vm190 = vcmp.eq.s32.totalorder %v186, 1
    %vm191 = vcmp.eq.s32.totalorder %v187, 1
    %v192 = vsel %vm188, %v163, 0.0
    %v193 = vsel %vm189, %v162, 0.0
    %v194 = vsel %vm190, %v161, 0.0
    %v195 = vsel %vm191, %v160, 0.0
    %196 = vrot.lane.b32.xlu0 %v24, 1
    %v197 = vpop.permute.xlu0 %196
    %198 = vrot.lane.b32.xlu0 %v45, 1
    %v199 = vpop.permute.xlu0 %198
    %200 = vrot.lane.b32.xlu0 %v25, 1
    %v201 = vpop.permute.xlu0 %200
    %202 = vrot.lane.b32.xlu0 %v46, 1
    %v203 = vpop.permute.xlu0 %202
    %vm204 = vcmp.lt.s32.totalorder %v27, 1
    %v205 = vsel %vm204, %v201, %v203
    %v206 = vsel %vm204, %v199, %v201
    %v207 = vsel %vm204, %v197, %v199
    %v208 = vsel %vm204, %v203, %v197
    %vm209 = vcmp.ge.s32.totalorder %v35, 0
    %vm210 = vcmp.ge.s32.totalorder %v36, 0
    %vm211 = vcmp.ge.s32.totalorder %v37, 0
    %vm212 = vcmp.ge.s32.totalorder %v38, 0
    %vm213 = vcmp.lt.s32.totalorder %v35, 16
    %vm214 = vcmp.lt.s32.totalorder %v36, 16
    %vm215 = vcmp.lt.s32.totalorder %v37, 16
    %vm216 = vcmp.lt.s32.totalorder %v38, 16
    %vm217 = vmand %vm209, %vm213
    %vm218 = vmand %vm210, %vm214
    %vm219 = vmand %vm211, %vm215
    %vm220 = vmand %vm212, %vm216
    %vm221 = vmand %vm217, %vm82
    %vm222 = vmand %vm218, %vm83
    %vm223 = vmand %vm219, %vm84
    %vm224 = vmand %vm220, %vm85
    %vm225 = vmand %vm221, %vm90
    %vm226 = vmand %vm222, %vm91
    %vm227 = vmand %vm223, %vm92
    %vm228 = vmand %vm224, %vm93
    %v229 = vsel %vm225, 1, 0
    %v230 = vsel %vm226, 1, 0
    %v231 = vsel %vm227, 1, 0
    %v232 = vsel %vm228, 1, 0
    %vm233 = vcmp.eq.s32.totalorder %v229, 1
    %vm234 = vcmp.eq.s32.totalorder %v230, 1
    %vm235 = vcmp.eq.s32.totalorder %v231, 1
    %vm236 = vcmp.eq.s32.totalorder %v232, 1
    %v237 = vsel %vm233, %v208, 0.0
    %v238 = vsel %vm234, %v207, 0.0
    %v239 = vsel %vm235, %v206, 0.0
    %v240 = vsel %vm236, %v205, 0.0
    %vm241 = vmand %vm217, %vm123
    %vm242 = vmand %vm218, %vm124
    %vm243 = vmand %vm219, %vm125
    %vm244 = vmand %vm220, %vm126
    %vm245 = vmand %vm241, %vm131
    %vm246 = vmand %vm242, %vm132
    %vm247 = vmand %vm243, %vm133
    %vm248 = vmand %vm244, %vm134
    %v249 = vsel %vm245, 1, 0
    %v250 = vsel %vm246, 1, 0
    %v251 = vsel %vm247, 1, 0
    %v252 = vsel %vm248, 1, 0
    %vm253 = vcmp.eq.s32.totalorder %v249, 1
    %vm254 = vcmp.eq.s32.totalorder %v250, 1
    %vm255 = vcmp.eq.s32.totalorder %v251, 1
    %vm256 = vcmp.eq.s32.totalorder %v252, 1
    %v257 = vsel %vm253, %v24, 0.0
    %v258 = vsel %vm254, %v45, 0.0
    %v259 = vsel %vm255, %v25, 0.0
    %v260 = vsel %vm256, %v46, 0.0
    %261 = vrot.lane.b32.xlu0 %v24, 127
    %v262 = vpop.permute.xlu0 %261
    %263 = vrot.lane.b32.xlu0 %v45, 127
    %v264 = vpop.permute.xlu0 %263
    %265 = vrot.lane.b32.xlu0 %v25, 127
    %v266 = vpop.permute.xlu0 %265
    %267 = vrot.lane.b32.xlu0 %v46, 127
    %v268 = vpop.permute.xlu0 %267
    %vm269 = vcmp.lt.s32.totalorder %v27, 127
    %v270 = vsel %vm269, %v266, %v268
    %v271 = vsel %vm269, %v264, %v266
    %v272 = vsel %vm269, %v262, %v264
    %v273 = vsel %vm269, %v268, %v262
    %vm274 = vmand %vm217, %vm168
    %vm275 = vmand %vm218, %vm169
    %vm276 = vmand %vm219, %vm170
    %vm277 = vmand %vm220, %vm171
    %vm278 = vmand %vm274, %vm176
    %vm279 = vmand %vm275, %vm177
    %vm280 = vmand %vm276, %vm178
    %vm281 = vmand %vm277, %vm179
    %v282 = vsel %vm278, 1, 0
    %v283 = vsel %vm279, 1, 0
    %v284 = vsel %vm280, 1, 0
    %v285 = vsel %vm281, 1, 0
    %vm286 = vcmp.eq.s32.totalorder %v282, 1
    %vm287 = vcmp.eq.s32.totalorder %v283, 1
    %vm288 = vcmp.eq.s32.totalorder %v284, 1
    %vm289 = vcmp.eq.s32.totalorder %v285, 1
    %v290 = vsel %vm286, %v272, 0.0
    %v291 = vsel %vm287, %v271, 0.0
    %v292 = vsel %vm288, %v270, 0.0
    %v293 = vsel %vm289, %v273, 0.0
    %294 = vrot.lane.b32.xlu0 %v24, 113
    %v295 = vpop.permute.xlu0 %294
    %296 = vrot.lane.b32.xlu0 %v45, 113
    %v297 = vpop.permute.xlu0 %296
    %298 = vrot.lane.b32.xlu0 %v25, 113
    %v299 = vpop.permute.xlu0 %298
    %300 = vrot.lane.b32.xlu0 %v46, 113
    %v301 = vpop.permute.xlu0 %300
    %vm302 = vcmp.lt.s32.totalorder %v27, 113
    %v303 = vsel %vm302, %v299, %v301
    %v304 = vsel %vm302, %v297, %v299
    %v305 = vsel %vm302, %v295, %v297
    %v306 = vsel %vm302, %v301, %v295
    %v307 = vadd.s32 %v35, 1
    %v308 = vadd.s32 %v36, 1
    %v309 = vadd.s32 %v37, 1
    %v310 = vadd.s32 %v38, 1
    %vm311 = vcmp.ge.s32.totalorder %v307, 0
    %vm312 = vcmp.ge.s32.totalorder %v308, 0
    %vm313 = vcmp.ge.s32.totalorder %v309, 0
    %vm314 = vcmp.ge.s32.totalorder %v310, 0
    %vm315 = vcmp.lt.s32.totalorder %v307, 16
    %vm316 = vcmp.lt.s32.totalorder %v308, 16
    %vm317 = vcmp.lt.s32.totalorder %v309, 16
    %vm318 = vcmp.lt.s32.totalorder %v310, 16
    %vm319 = vmand %vm311, %vm315
    %vm320 = vmand %vm312, %vm316
    %vm321 = vmand %vm313, %vm317
    %vm322 = vmand %vm314, %vm318
    %vm323 = vmand %vm319, %vm82
    %vm324 = vmand %vm320, %vm83
    %vm325 = vmand %vm321, %vm84
    %vm326 = vmand %vm322, %vm85
    %vm327 = vmand %vm323, %vm90
    %vm328 = vmand %vm324, %vm91
    %vm329 = vmand %vm325, %vm92
    %vm330 = vmand %vm326, %vm93
    %v331 = vsel %vm327, 1, 0
    %v332 = vsel %vm328, 1, 0
    %v333 = vsel %vm329, 1, 0
    %v334 = vsel %vm330, 1, 0
    %vm335 = vcmp.eq.s32.totalorder %v331, 1
    %vm336 = vcmp.eq.s32.totalorder %v332, 1
    %vm337 = vcmp.eq.s32.totalorder %v333, 1
    %vm338 = vcmp.eq.s32.totalorder %v334, 1
    %v339 = vsel %vm335, %v305, 0.0
    %v340 = vsel %vm336, %v304, 0.0
    %v341 = vsel %vm337, %v303, 0.0
    %v342 = vsel %vm338, %v306, 0.0
    %343 = vrot.lane.b32.xlu0 %v24, 112
    %v344 = vpop.permute.xlu0 %343
    %345 = vrot.lane.b32.xlu0 %v45, 112
    %v346 = vpop.permute.xlu0 %345
    %347 = vrot.lane.b32.xlu0 %v25, 112
    %v348 = vpop.permute.xlu0 %347
    %349 = vrot.lane.b32.xlu0 %v46, 112
    %v350 = vpop.permute.xlu0 %349
    %vm351 = vcmp.lt.s32.totalorder %v27, 112
    %v352 = vsel %vm351, %v348, %v350
    %v353 = vsel %vm351, %v346, %v348
    %v354 = vsel %vm351, %v344, %v346
    %v355 = vsel %vm351, %v350, %v344
    %vm356 = vmand %vm319, %vm123
    %vm357 = vmand %vm320, %vm124
    %vm358 = vmand %vm321, %vm125
    %vm359 = vmand %vm322, %vm126
    %vm360 = vmand %vm356, %vm131
    %vm361 = vmand %vm357, %vm132
    %vm362 = vmand %vm358, %vm133
    %vm363 = vmand %vm359, %vm134
    %v364 = vsel %vm360, 1, 0
    %v365 = vsel %vm361, 1, 0
    %v366 = vsel %vm362, 1, 0
    %v367 = vsel %vm363, 1, 0
    %vm368 = vcmp.eq.s32.totalorder %v364, 1
    %vm369 = vcmp.eq.s32.totalorder %v365, 1
    %vm370 = vcmp.eq.s32.totalorder %v366, 1
    %vm371 = vcmp.eq.s32.totalorder %v367, 1
    %v372 = vsel %vm368, %v354, 0.0
    %v373 = vsel %vm369, %v353, 0.0
    %v374 = vsel %vm370, %v352, 0.0
    %v375 = vsel %vm371, %v355, 0.0
    %376 = vrot.lane.b32.xlu0 %v24, 111
    %v377 = vpop.permute.xlu0 %376
    %378 = vrot.lane.b32.xlu0 %v45, 111
    %v379 = vpop.permute.xlu0 %378
    %380 = vrot.lane.b32.xlu0 %v25, 111
    %v381 = vpop.permute.xlu0 %380
    %382 = vrot.lane.b32.xlu0 %v46, 111
    %v383 = vpop.permute.xlu0 %382
    %vm384 = vcmp.lt.s32.totalorder %v27, 111
    %v385 = vsel %vm384, %v381, %v383
    %v386 = vsel %vm384, %v379, %v381
    %v387 = vsel %vm384, %v377, %v379
    %v388 = vsel %vm384, %v383, %v377
    %vm389 = vmand %vm319, %vm168
    %vm390 = vmand %vm320, %vm169
    %vm391 = vmand %vm321, %vm170
    %vm392 = vmand %vm322, %vm171
    %vm393 = vmand %vm389, %vm176
    %vm394 = vmand %vm390, %vm177
    %vm395 = vmand %vm391, %vm178
    %vm396 = vmand %vm392, %vm179
    %v397 = vsel %vm393, 1, 0
    %v398 = vsel %vm394, 1, 0
    %v399 = vsel %vm395, 1, 0
    %v400 = vsel %vm396, 1, 0
    %vm401 = vcmp.eq.s32.totalorder %v397, 1
    %vm402 = vcmp.eq.s32.totalorder %v398, 1
    %vm403 = vcmp.eq.s32.totalorder %v399, 1
    %vm404 = vcmp.eq.s32.totalorder %v400, 1
    %v405 = vsel %vm401, %v387, 0.0
    %v406 = vsel %vm402, %v386, 0.0
    %v407 = vsel %vm403, %v385, 0.0
    %v408 = vsel %vm404, %v388, 0.0
    %v413 = vrot.slane %v147, 4
    %v414 = vrot.slane %v148, 4
    %v415 = vrot.slane %v149, 4
    %v416 = vrot.slane %v150, 4
    %v425 = vrot.slane %v237, 4
    %v426 = vrot.slane %v238, 4
    %v427 = vrot.slane %v239, 4
    %v428 = vrot.slane %v240, 4
    %v437 = vrot.slane %v290, 4
    %v438 = vrot.slane %v291, 4
    %v439 = vrot.slane %v292, 4
    %v440 = vrot.slane %v293, 4
    %v449 = vrot.slane %v372, 4
    %v450 = vrot.slane %v373, 4
    %v451 = vrot.slane %v374, 4
    %v452 = vrot.slane %v375, 4
    %vm457 = vcmask 1043456
    %v458 = vsel %vm457, %v106, %v413
    %v459 = vsel %vm457, %v107, %v414
    %v460 = vsel %vm457, %v108, %v415
    %v461 = vsel %vm457, %v109, %v416
    %v462 = vsel %vm457, %v192, %v425
    %v463 = vsel %vm457, %v193, %v426
    %v464 = vsel %vm457, %v194, %v427
    %v465 = vsel %vm457, %v195, %v428
    %v466 = vsel %vm457, %v257, %v437
    %v467 = vsel %vm457, %v258, %v438
    %v468 = vsel %vm457, %v259, %v439
    %v469 = vsel %vm457, %v260, %v440
    %v470 = vsel %vm457, %v339, %v449
    %v471 = vsel %vm457, %v340, %v450
    %v472 = vsel %vm457, %v341, %v451
    %v473 = vsel %vm457, %v342, %v452
    %v474 = vld [vmem:[%s1] sm:$0xff]
    %v475 = vld [vmem:[%s2] sm:$0xff]
    %477 = vset.pattern.permute.xlu0 0
    %478 = vperm.xlu0 %477, %v475
    %v479 = vpop.permute.xlu0 %478
    %vm481 = vcmask 293888
    %v483 = vsel %vm481, %v474, 0
    %v486 = vsel %vm457, %v405, 0
    %v489 = vsel %vm457, %v406, 0
    %v492 = vsel %vm457, %v407, 0
    %v495 = vsel %vm457, %v408, 0
    %497 = vmatprep.subr.mxu0 %v459
    %498 = vmatpush1.msra.mxu0 %v458
    %499 = vmatprep.subr.mxu0 %v463
    %500 = vmatpush1.msra.mxu0 %v462
    %501 = vmatprep.subr.mxu0 %v467
    %502 = vmatpush1.msra.mxu0 %v466
    %503 = vmatprep.subr.mxu0 %v471
    %504 = vmatpush1.msra.mxu0 %v470
    %505 = vmatprep.subr.mxu0 %v489
    %506 = vmatpush1.msra.mxu0 %v486
    %507 = vmatprep.subr.mxu0 0.0
    %508 = vmatpush1.msra.mxu0 0.0
    %509 = vmatprep.subr.mxu0 0.0
    %510 = vmatpush1.msra.mxu0 0.0
    %511 = vmatprep.subr.mxu0 0.0
    %512 = vmatpush1.msra.mxu0 0.0
    %513 = vmatprep.subr.mxu0 0.0
    %514 = vmatpush1.msra.mxu0 0.0
    %515 = vmatprep.subr.mxu0 0.0
    %516 = vmatpush1.msra.mxu0 0.0
    %517 = vmatprep.subr.mxu0 0.0
    %518 = vmatpush1.msra.mxu0 0.0
    %519 = vmatprep.subr.mxu0 0.0
    %520 = vmatpush1.msra.mxu0 0.0
    %521 = vmatprep.subr.mxu0 0.0
    %522 = vmatpush1.msra.mxu0 0.0
    %523 = vmatprep.subr.mxu0 0.0
    %524 = vmatpush1.msra.mxu0 0.0
    %525 = vmatprep.subr.mxu0 0.0
    %526 = vmatpush1.msra.mxu0 0.0
    %527 = vmatprep.subr.mxu0 0.0
    %528 = vmatpush1.msra.mxu0 0.0
    %529 = vmatprep.subr.mxu0 0.0
    %530 = vmatpush1.msra.mxu0 0.0
    %531 = vmatprep.subr.mxu0 0.0
    %532 = vmatpush1.msra.mxu0 0.0
    %533 = vmatprep.subr.mxu0 0.0
    %534 = vmatpush1.msra.mxu0 0.0
    %535 = vmatprep.subr.mxu0 0.0
    %536 = vmatpush1.msra.mxu0 0.0
    %537 = vmatprep.subr.mxu0 0.0
    %538 = vmatpush1.msra.mxu0 0.0
    %539 = vmatprep.subr.mxu0 0.0
    %540 = vmatpush1.msra.mxu0 0.0
    %541 = vmatprep.subr.mxu0 0.0
    %542 = vmatpush1.msra.mxu0 0.0
    %543 = vmatprep.subr.mxu0 0.0
    %544 = vmatpush1.msra.mxu0 0.0
    %545 = vmatprep.subr.mxu0 0.0
    %546 = vmatpush1.msra.mxu0 0.0
    %547 = vmatprep.subr.mxu0 0.0
    %548 = vmatpush1.msra.mxu0 0.0
    %549 = vmatprep.subr.mxu0 0.0
    %550 = vmatpush1.msra.mxu0 0.0
    %551 = vmatprep.subr.mxu0 0.0
    %552 = vmatpush1.msra.mxu0 0.0
    %553 = vmatprep.subr.mxu0 0.0
    %554 = vmatpush1.msra.mxu0 0.0
    %555 = vmatprep.subr.mxu0 0.0
    %556 = vmatpush1.msra.mxu0 0.0
    %557 = vmatprep.subr.mxu0 0.0
    %558 = vmatpush1.msra.mxu0 0.0
    %559 = vmatprep.subr.mxu0 0.0
    %560 = vmatpush1.msra.mxu0 0.0
    %561 = vmatprep.mubr.f32.mxu0 0.0
    %562 = vmatmul.mubr.f32.gmra.mrb[0].mxu0 %v483
    %v563 = vpop.f32.mrb[0].mxu0
    %v564 = vadd.f32 %v479, %v563
    %v565 = vpop.f32.mrb[0].mxu0
    %v566 = vadd.f32 %v479, %v565
    %567 = vdwg.mxu0
    %568 = vmatprep.subr.mxu0 %v461
    %569 = vmatpush1.msra.mxu0 %v460
    %570 = vmatprep.subr.mxu0 %v465
    %571 = vmatpush1.msra.mxu0 %v464
    %572 = vmatprep.subr.mxu0 %v469
    %573 = vmatpush1.msra.mxu0 %v468
    %574 = vmatprep.subr.mxu0 %v473
    %575 = vmatpush1.msra.mxu0 %v472
    %576 = vmatprep.subr.mxu0 %v495
    %577 = vmatpush1.msra.mxu0 %v492
    %578 = vmatprep.subr.mxu0 0.0
    %579 = vmatpush1.msra.mxu0 0.0
    %580 = vmatprep.subr.mxu0 0.0
    %581 = vmatpush1.msra.mxu0 0.0
    %582 = vmatprep.subr.mxu0 0.0
    %583 = vmatpush1.msra.mxu0 0.0
    %584 = vmatprep.subr.mxu0 0.0
    %585 = vmatpush1.msra.mxu0 0.0
    %586 = vmatprep.subr.mxu0 0.0
    %587 = vmatpush1.msra.mxu0 0.0
    %588 = vmatprep.subr.mxu0 0.0
    %589 = vmatpush1.msra.mxu0 0.0
    %590 = vmatprep.subr.mxu0 0.0
    %591 = vmatpush1.msra.mxu0 0.0
    %592 = vmatprep.subr.mxu0 0.0
    %593 = vmatpush1.msra.mxu0 0.0
    %594 = vmatprep.subr.mxu0 0.0
    %595 = vmatpush1.msra.mxu0 0.0
    %596 = vmatprep.subr.mxu0 0.0
    %597 = vmatpush1.msra.mxu0 0.0
    %598 = vmatprep.subr.mxu0 0.0
    %599 = vmatpush1.msra.mxu0 0.0
    %600 = vmatprep.subr.mxu0 0.0
    %601 = vmatpush1.msra.mxu0 0.0
    %602 = vmatprep.subr.mxu0 0.0
    %603 = vmatpush1.msra.mxu0 0.0
    %604 = vmatprep.subr.mxu0 0.0
    %605 = vmatpush1.msra.mxu0 0.0
    %606 = vmatprep.subr.mxu0 0.0
    %607 = vmatpush1.msra.mxu0 0.0
    %608 = vmatprep.subr.mxu0 0.0
    %609 = vmatpush1.msra.mxu0 0.0
    %610 = vmatprep.subr.mxu0 0.0
    %611 = vmatpush1.msra.mxu0 0.0
    %612 = vmatprep.subr.mxu0 0.0
    %613 = vmatpush1.msra.mxu0 0.0
    %614 = vmatprep.subr.mxu0 0.0
    %615 = vmatpush1.msra.mxu0 0.0
    %616 = vmatprep.subr.mxu0 0.0
    %617 = vmatpush1.msra.mxu0 0.0
    %618 = vmatprep.subr.mxu0 0.0
    %619 = vmatpush1.msra.mxu0 0.0
    %620 = vmatprep.subr.mxu0 0.0
    %621 = vmatpush1.msra.mxu0 0.0
    %622 = vmatprep.subr.mxu0 0.0
    %623 = vmatpush1.msra.mxu0 0.0
    %624 = vmatprep.subr.mxu0 0.0
    %625 = vmatpush1.msra.mxu0 0.0
    %626 = vmatprep.subr.mxu0 0.0
    %627 = vmatpush1.msra.mxu0 0.0
    %628 = vmatprep.subr.mxu0 0.0
    %629 = vmatpush1.msra.mxu0 0.0
    %630 = vmatprep.subr.mxu0 0.0
    %631 = vmatpush1.msra.mxu0 0.0
    %632 = vmatprep.mubr.f32.mxu0 0.0
    %633 = vmatmul.mubr.f32.gmra.mrb[0].mxu0 %v483
    %v634 = vpop.f32.mrb[0].mxu0
    %v635 = vadd.f32 %v479, %v634
    %v636 = vpop.f32.mrb[0].mxu0
    %v637 = vadd.f32 %v479, %v636
    %638 = vdwg.mxu0
    %v639 = vld [vmem:[%s3] sm:$0xff]
    %v640 = vld [vmem:[%s4] sm:$0x1]
    %641 = vst [vmem:[%s5] sm:$0xff] %v564
    %642 = vst [vmem:[%s5 + $0x8] sm:$0xff] %v566
    %v643 = vmax.f32 %v564, 0.0
    %v644 = vmax.f32 %v566, 0.0
    %v645 = vadd.f32 %v643, %v644
    %646 = vadd.xlane.f32.xlu0 %v645
    %v647 = vpop.xlane.xlu0 %646
    %v648 = vrcp.pop 256.0
    %v649 = vmul.f32 %v647, %v648
    %vm650 = vcmask 7168
    %651 = vst.msk [vmem:[%s6] sm:$0xff] %vm650, %v649
    %v652 = vmul.f32 %v649, %v639
    %vm653 = vcmask 80896
    %v654 = vsel %vm653, %v652, 0.0
    %v655 = vrot.slane %v654, 4
    %v656 = vadd.f32 %v654, %v655
    %v657 = vrot.slane %v656, 2
    %v658 = vadd.f32 %v656, %v657
    %v659 = vrot.slane %v658, 1
    %v660 = vadd.f32 %v658, %v659
    %v661 = vadd.f32 %v660, %v640
    %vm662 = vcmask 73728
    %663 = vst.msk [vmem:[#allocation2] sm:$0x1] %vm662, %v661
    %s664 = scalar_lea.vmem %s5, 16
    %665 = vst [vmem:[%s664] sm:$0xff] %v635
    %666 = vst [vmem:[%s664 + $0x8] sm:$0xff] %v637
    %v667 = vmax.f32 %v635, 0.0
    %v668 = vmax.f32 %v637, 0.0
    %v669 = vadd.f32 %v667, %v668
    %670 = vadd.xlane.f32.xlu0 %v669
    %v671 = vpop.xlane.xlu0 %670
    %v672 = vmul.f32 %v671, %v648
    %s673 = scalar_lea.vmem %s6, 8
    %674 = vst.msk [vmem:[%s673] sm:$0xff] %vm650, %v672
    %v675 = vmul.f32 %v672, %v639
    %v676 = vsel %vm653, %v675, 0.0
    %v677 = vrot.slane %v676, 4
    %v678 = vadd.f32 %v676, %v677
    %v679 = vrot.slane %v678, 2
    %v680 = vadd.f32 %v678, %v679
    %v681 = vrot.slane %v680, 1
    %v682 = vadd.f32 %v680, %v681
    %v683 = vadd.f32 %v682, %v640
    %s684 = scalar_lea.vmem [#allocation2], 1
    %685 = vst.msk [vmem:[%s684] sm:$0x1] %vm662, %v683
    // Predicated region
    $region22: #{fused_forward.1} parent=1 // pred_check
      _
    $region23: #{fused_forward.1} parent=1 // pred_check_branch
      %687 = sbr.rel (0) target = $region25
    $region24: #{fused_forward.1} parent=1 // pred_region
      _
    $region25: #{fused_forward.1} parent=1 // pred_fallthru
      _
    // Predicated region
    $region26: #{fused_forward.1} parent=1 // pred_check
      _
    $region27: #{fused_forward.1} parent=1 // pred_check_branch
      %689 = sbr.rel (0) target = $region29
    $region28: #{fused_forward.1} parent=1 // pred_region
      _
    $region29: #{fused_forward.1} parent=1 // pred_fallthru
      _
    // Predicated region
    $region30: #{fused_forward.1} parent=1 // pred_check
      _
    $region31: #{fused_forward.1} parent=1 // pred_check_branch
      %691 = sbr.rel (0) target = $region33
    $region32: #{fused_forward.1} parent=1 // pred_region
      %s693 = ssub.s32 32, 32
      %694 = vsyncadd [#allocation3], %s693
      %s695 = sshll.u32 [#allocation2], 4
      %s696 = int_to_ptr.vmem [resolvable:$true] %s695
      %701 = dma.vmem_to_hbm [thread:$0]  %s696, 32, %s7, [#allocation3], 16, 16, 1
    $region33: #{fused_forward.1} parent=1 // pred_fallthru
      _
    // Predicated region
    $region34: #{fused_forward.1} parent=1 // pred_check
      _
    $region35: #{fused_forward.1} parent=1 // pred_check_branch
      %703 = sbr.rel (0) target = $region37
    $region36: #{fused_forward.1} parent=1 // pred_region
      _
    $region37: #{fused_forward.1} parent=1 // pred_fallthru
      _
    // Predicated region
    $region38: #{fused_forward.1} parent=1 // pred_check
      _
    $region39: #{fused_forward.1} parent=1 // pred_check_branch
      %705 = sbr.rel (0) target = $region41
    $region40: #{fused_forward.1} parent=1 // pred_region
      _
    $region41: #{fused_forward.1} parent=1 // pred_fallthru
      _
    // Predicated region
    $region42: #{fused_forward.1} parent=1 // pred_check
      _
    $region43: #{fused_forward.1} parent=1 // pred_check_branch
      %707 = sbr.rel (0) target = $region45
    $region44: #{fused_forward.1} parent=1 // pred_region
      %708 = dma.done [#allocation3], 32
    $region45: #{fused_forward.1} parent=1 // pred_fallthru
      _
    %709 = vsyncpa [#allocation3], 1

</llo_original>
